<compile_context>
chip_gen: v6e
topology: v6e:2x2x1
jax: 0.10.0
libtpu: 0.0.40
codegen_flags: <defaults>
</compile_context>

<pallas_src>
import functools

import jax
import jax.numpy as jnp
from jax.experimental import pallas as pl
from jax.experimental.pallas import tpu as pltpu


# ---------------------------------------------------------------------------
# Fused kernel: act_{L-1}(... act_1(act_0(x @ W0 + b0) @ W1 + b1) ...)
# ---------------------------------------------------------------------------
def _ae_fused_kernel(x_ref, *refs, acts, compute_dtype):
    """refs = (w0, b0, w1, b1, ..., w_{L-1}, b_{L-1}, o_ref)."""
    o_ref = refs[-1]
    n_layers = len(acts)
    h = x_ref[...].astype(compute_dtype)
    for li, act in enumerate(acts):
        w_ref = refs[2 * li]          # compute_dtype (e.g. bf16)
        b_ref = refs[2 * li + 1]      # f32
        y = jnp.dot(h, w_ref[...], preferred_element_type=jnp.float32)
        y = y + b_ref[...].astype(jnp.float32)      # (1, Dout) broadcasts
        if act == "relu":
            y = jnp.maximum(y, 0.0)
        elif act == "tanh":
            y = jnp.tanh(y)
        # Carry inter-layer activation in compute_dtype (halves live bytes);
        # the final result is stored from f32.
        h = y.astype(compute_dtype) if li + 1 < n_layers else y
    o_ref[...] = h.astype(o_ref.dtype)


# ---------------------------------------------------------------------------
# Small helpers
# ---------------------------------------------------------------------------
def _round_up(x, m):
    return (x + m - 1) // m * m


def _cdiv(a, b):
    return -(-a // b)


def _pad2(a, rows, cols):
    r, c = a.shape
    if (r, c) == (rows, cols):
        return a
    return jnp.pad(a, ((0, rows - r), (0, cols - c)))


_single_buffer_cache = None


def _probe_single_buffered_weights():
    """True iff this jax can single-buffer grid-invariant operands via
    pipeline_mode=pl.Buffered(1); otherwise fall back to default buffering."""
    if not hasattr(pl, "Buffered"):
        return False
    try:
        spec = pl.BlockSpec((8, 128), lambda i: (0, 0),
                            pipeline_mode=pl.Buffered(1))

        def _k(w_ref, o_ref):
            o_ref[...] = w_ref[...] * 2.0

        fn = pl.pallas_call(
            _k,
            out_shape=jax.ShapeDtypeStruct((8, 128), jnp.float32),
            grid=(2,),
            in_specs=[spec],
            out_specs=pl.BlockSpec((8, 128), lambda i: (0, 0)),
        )
        jax.jit(fn).lower(jnp.zeros((8, 128), jnp.float32)).compile()
        return True
    except Exception:
        return False


def _single_buffered_weights_supported():
    global _single_buffer_cache
    if _single_buffer_cache is None:
        _single_buffer_cache = _probe_single_buffered_weights()
    return _single_buffer_cache


def _const_spec(block_shape):
    """BlockSpec for a grid-invariant (fetched-once) operand."""
    idx = lambda i: (0,) * len(block_shape)
    if _single_buffered_weights_supported():
        return pl.BlockSpec(block_shape, idx, pipeline_mode=pl.Buffered(1))
    return pl.BlockSpec(block_shape, idx)


def _vmem_budget_bytes():
    """Per-generation scoped-VMEM target: ~82% of physical VMEM (leaves
    headroom for Mosaic internal scratch and output double-buffers)."""
    try:
        cap = int(pltpu.get_tpu_info().vmem_capacity_bytes)
    except Exception:
        cap = 64 << 20          # conservative (v7x-sized) fallback
    return int(cap * 0.82)


def _batch_tiling(batch, max_tile):
    """Single grid step for small batches; minimal padding when tiling."""
    b_pad = _round_up(max(batch, 1), 8)
    if b_pad <= max_tile:
        return b_pad, b_pad, 1
    steps = _cdiv(b_pad, max_tile)
    tb = _round_up(_cdiv(b_pad, steps), 8)
    return tb * steps, tb, steps


# ---------------------------------------------------------------------------
# One fused chunk (a consecutive run of layers) = one pallas_call
# ---------------------------------------------------------------------------
def _run_chunk(h, layers_p, acts, tb, grid_steps, out_dtype, compute_dtype,
               vmem_budget, core_parallel):
    b_pad, din0 = h.shape
    param_mult = 1 if _single_buffered_weights_supported() else 2

    flat_args = [h]
    in_specs = [pl.BlockSpec((tb, din0), lambda i: (i, 0))]
    vmem_param_bytes = 0
    hbm_param_bytes = 0
    flops = 0
    transcendentals = 0
    max_dim = din0
    for (w_p, b_p), act in zip(layers_p, acts):
        din_p, dout_p = w_p.shape
        flat_args += [w_p, b_p]
        in_specs += [_const_spec((din_p, dout_p)), _const_spec((1, dout_p))]
        layer_bytes = din_p * dout_p * w_p.dtype.itemsize + 8 * dout_p * 4
        vmem_param_bytes += param_mult * layer_bytes
        hbm_param_bytes += layer_bytes
        flops += 2 * b_pad * din_p * dout_p
        if act == "tanh":
            transcendentals += b_pad * dout_p
        max_dim = max(max_dim, dout_p)
    dout_last = layers_p[-1][0].shape[1]
    out_itemsize = jnp.dtype(out_dtype).itemsize

    # VMEM: resident weights + double-buffered x/out tiles + a few live f32
    # activation tiles of the widest layer, plus slack.
    io_bytes = 2 * tb * (din0 * h.dtype.itemsize + dout_last * out_itemsize)
    act_bytes = 4 * tb * max_dim
    vmem_est = vmem_param_bytes + io_bytes + 3 * act_bytes + (4 << 20)
    vmem_limit = int(min(max(vmem_est, 32 << 20), vmem_budget))
    # TODO(synk): if a SINGLE layer's weights alone exceed vmem_budget, stream
    # that layer's K dimension with pltpu.emit_pipeline + a VMEM f32
    # accumulator instead of clamping the limit here.

    cost = pl.CostEstimate(
        flops=int(flops),
        transcendentals=int(transcendentals),
        bytes_accessed=int(b_pad * din0 * h.dtype.itemsize
                           + b_pad * dout_last * out_itemsize
                           + hbm_param_bytes),   # weights DMA'd once
    )

    kernel = functools.partial(_ae_fused_kernel, acts=tuple(acts),
                               compute_dtype=compute_dtype)

    return pl.pallas_call(
        kernel,
        out_shape=jax.ShapeDtypeStruct((b_pad, dout_last), out_dtype),
        grid=(grid_steps,),
        in_specs=in_specs,
        out_specs=pl.BlockSpec((tb, dout_last), lambda i: (i, 0)),
        compiler_params=pltpu.CompilerParams(
            dimension_semantics=("parallel",) if core_parallel else ("arbitrary",),
            vmem_limit_bytes=vmem_limit,
        ),
        cost_estimate=cost,
    )(*flat_args)


# ---------------------------------------------------------------------------
# Public wrapper: padding, tiling, layer grouping
# ---------------------------------------------------------------------------
@functools.partial(jax.jit,
                   static_argnames=("compute_dtype", "max_batch_tile",
                                    "_force_weight_budget"))
def autoencoder_forward(x, enc_params, dec_params, *,
                        compute_dtype=jnp.bfloat16, max_batch_tile=256,
                        _force_weight_budget=None):
    """Exact semantics of AutoEncoder.forward: x_rec = decoder(encoder(x))."""
    layers = list(enc_params) + list(dec_params)
    n_enc, n_dec = len(enc_params), len(dec_params)
    # activation after each Linear:
    #   encoder: ReLU between layers, Tanh after the last encoder layer
    #   decoder: ReLU between layers, identity after the last decoder layer
    acts = tuple("tanh" if i == n_enc - 1 else "relu" for i in range(n_enc)) + \
           tuple("none" if i == n_dec - 1 else "relu" for i in range(n_dec))

    B, dim_x = x.shape
    dims = [dim_x] + [w.shape[1] for (w, _) in layers]
    dims_pad = [_round_up(d, 128) for d in dims]          # lane-dense features

    b_pad, tb, grid_steps = _batch_tiling(B, max_batch_tile)
    # Only shard across v7x's 2 TensorCores when the batch is large: each core
    # fetches its own weight copy and this kernel is weight-BW bound otherwise.
    core_parallel = grid_steps > 1 and b_pad >= 512

    w_itemsize = jnp.dtype(compute_dtype).itemsize
    param_mult = 1 if _single_buffered_weights_supported() else 2

    # Pad weights / biases and compute per-layer resident-VMEM bytes.
    layers_p, layer_bytes = [], []
    for li, (w, b) in enumerate(layers):
        din_p, dout_p = dims_pad[li], dims_pad[li + 1]
        w_p = _pad2(w, din_p, dout_p).astype(compute_dtype)
        b_p = _pad2(jnp.asarray(b).reshape(1, -1), 1, dout_p).astype(jnp.float32)
        layers_p.append((w_p, b_p))
        layer_bytes.append(param_mult * (din_p * dout_p * w_itemsize
                                         + 8 * dout_p * 4))

    vmem_budget = _vmem_budget_bytes()
    overhead = 4 * tb * max(dims_pad) * 4 + (8 << 20)     # live tiles + slack
    weight_budget = (_force_weight_budget if _force_weight_budget is not None
                     else max(vmem_budget - overhead, vmem_budget // 4))

    # Greedily fuse as many consecutive layers per pallas_call as fit the
    # weight budget (weight-streaming fallback = multiple fused chunks).
    groups, cur, cur_bytes = [], [], 0
    for li in range(len(layers)):
        if cur and cur_bytes + layer_bytes[li] > weight_budget:
            groups.append(cur)
            cur, cur_bytes = [], 0
        cur.append(li)
        cur_bytes += layer_bytes[li]
    groups.append(cur)

    h = jnp.pad(x, ((0, b_pad - B), (0, dims_pad[0] - dim_x)))
    for gi, group in enumerate(groups):
        last = gi == len(groups) - 1
        h = _run_chunk(
            h,
            [layers_p[li] for li in group],
            [acts[li] for li in group],
            tb, grid_steps,
            out_dtype=x.dtype if last else compute_dtype,
            compute_dtype=compute_dtype,
            vmem_budget=vmem_budget,
            core_parallel=core_parallel,
        )
    return h[:B, :dim_x]


# ---------------------------------------------------------------------------
# Parameter init (matches torch.nn.Linear default init; W stored as [Din, Dout])
# ---------------------------------------------------------------------------
def init_autoencoder_params(key, n, dim_x, dim_hidden, dtype=jnp.float32):
    def make_layer(k, din, dout):
        kw, kb = jax.random.split(k)
        bound = 1.0 / jnp.sqrt(jnp.array(din, dtype))
        w = jax.random.uniform(kw, (din, dout), dtype, -bound, bound)
        b = jax.random.uniform(kb, (1, dout), dtype, -bound, bound)
        return w, b

    enc_dims = [(dim_x, dim_hidden)] + [(dim_hidden, dim_hidden)] * (n - 1)
    dec_dims = [(dim_hidden, dim_hidden)] * (n - 1) + [(dim_hidden, dim_x)]
    keys = jax.random.split(key, len(enc_dims) + len(dec_dims))
    enc = [make_layer(k, di, do) for k, (di, do) in zip(keys[:len(enc_dims)], enc_dims)]
    dec = [make_layer(k, di, do) for k, (di, do) in zip(keys[len(enc_dims):], dec_dims)]
    return enc, dec


def _reference_forward(x, enc_params, dec_params):
    """Pure-JAX reference for correctness checking."""
    n_enc = len(enc_params)
    h = x
    for i, (w, b) in enumerate(enc_params):
        h = h @ w + b
        h = jnp.tanh(h) if i == n_enc - 1 else jnp.maximum(h, 0.0)
    n_dec = len(dec_params)
    y = h
    for i, (w, b) in enumerate(dec_params):
        y = y @ w + b
        if i != n_dec - 1:
            y = jnp.maximum(y, 0.0)
    return y


if __name__ == "__main__":
    # Small shapes consistent with the module: n=2 stacked layers,
    # batch=8, dim_x=32, dim_hidden=32.
    n, dim_x, dim_hidden = 2, 32, 32
    batch = 8

    key = jax.random.PRNGKey(0)
    k_params, k_x, k_x2 = jax.random.split(key, 3)
    enc_params, dec_params = init_autoencoder_params(k_params, n, dim_x, dim_hidden)
    x = jax.random.normal(k_x, (batch, dim_x), jnp.float32)

    ref = _reference_forward(x, enc_params, dec_params)

    # f32 matmul path: matches the pure-JAX reference closely.
    y_f32 = jax.block_until_ready(
        autoencoder_forward(x, enc_params, dec_params, compute_dtype=jnp.float32))
    assert y_f32.shape == (batch, dim_x)
    assert jnp.allclose(y_f32, ref, atol=2e-5, rtol=2e-5)

    # bf16 MXU path (v6e/v7x friendly), f32 accumulation.
    y_bf16 = jax.block_until_ready(
        autoencoder_forward(x, enc_params, dec_params, compute_dtype=jnp.bfloat16))
    assert y_bf16.shape == (batch, dim_x)
    assert jnp.allclose(y_bf16, ref, atol=1e-1, rtol=1e-1)

    # Multi-tile grid path (batch > max_batch_tile) — exercises batch tiling.
    x_big = jax.random.normal(k_x2, (300, dim_x), jnp.float32)
    ref_big = _reference_forward(x_big, enc_params, dec_params)
    y_big = jax.block_until_ready(
        autoencoder_forward(x_big, enc_params, dec_params,
                            compute_dtype=jnp.float32))
    assert y_big.shape == (300, dim_x)
    assert jnp.allclose(y_big, ref_big, atol=2e-5, rtol=2e-5)

    # Weight-streaming fallback (layer chain split across several fused
    # pallas_calls) — force it with a tiny per-chunk weight budget.
    y_chunked = jax.block_until_ready(
        autoencoder_forward(x, enc_params, dec_params,
                            compute_dtype=jnp.float32,
                            _force_weight_budget=64 * 1024))
    assert jnp.allclose(y_chunked, ref, atol=2e-5, rtol=2e-5)

    print("KERNEL_OK")
</pallas_src>

<mosaic_0001>
module attributes {stable_mosaic.version = 11 : i64} {
  func.func @_ae_fused_kernel(%arg0: i32, %arg1: memref<8x128xf32, #tpu.memory_space<vmem>>, %arg2: memref<128x128xf32, #tpu.memory_space<vmem>>, %arg3: memref<1x128xf32, #tpu.memory_space<vmem>>, %arg4: memref<128x128xf32, #tpu.memory_space<vmem>>, %arg5: memref<1x128xf32, #tpu.memory_space<vmem>>, %arg6: memref<128x128xf32, #tpu.memory_space<vmem>>, %arg7: memref<1x128xf32, #tpu.memory_space<vmem>>, %arg8: memref<128x128xf32, #tpu.memory_space<vmem>>, %arg9: memref<1x128xf32, #tpu.memory_space<vmem>>, %arg10: memref<8x128xf32, #tpu.memory_space<vmem>>) attributes {dimension_semantics = [#tpu.dimension_semantics<arbitrary>], iteration_bounds = array<i64: 1>, scalar_prefetch = 0 : i64, scratch_operands = 0 : i64, tpu.core_type = #tpu.core_type<tc>, window_params = [{transform_indices = @transform_0, window_bounds = array<i64: 8, 128>}, {pipeline_mode = #tpu.pipeline_mode<synchronous>, transform_indices = @transform_1, window_bounds = array<i64: 128, 128>}, {pipeline_mode = #tpu.pipeline_mode<synchronous>, transform_indices = @transform_2, window_bounds = array<i64: 1, 128>}, {pipeline_mode = #tpu.pipeline_mode<synchronous>, transform_indices = @transform_3, window_bounds = array<i64: 128, 128>}, {pipeline_mode = #tpu.pipeline_mode<synchronous>, transform_indices = @transform_4, window_bounds = array<i64: 1, 128>}, {pipeline_mode = #tpu.pipeline_mode<synchronous>, transform_indices = @transform_5, window_bounds = array<i64: 128, 128>}, {pipeline_mode = #tpu.pipeline_mode<synchronous>, transform_indices = @transform_6, window_bounds = array<i64: 1, 128>}, {pipeline_mode = #tpu.pipeline_mode<synchronous>, transform_indices = @transform_7, window_bounds = array<i64: 128, 128>}, {pipeline_mode = #tpu.pipeline_mode<synchronous>, transform_indices = @transform_8, window_bounds = array<i64: 1, 128>}, {transform_indices = @transform_9, window_bounds = array<i64: 8, 128>}]} {
    %c0 = arith.constant 0 : index
    %c0_0 = arith.constant 0 : index
    %0 = vector.load %arg1[%c0, %c0_0] : memref<8x128xf32, #tpu.memory_space<vmem>>, vector<8x128xf32>
    %c0_1 = arith.constant 0 : index
    %c0_2 = arith.constant 0 : index
    %1 = vector.load %arg2[%c0_1, %c0_2] : memref<128x128xf32, #tpu.memory_space<vmem>>, vector<128x128xf32>
    %cst = arith.constant dense<0.000000e+00> : vector<8x128xf32>
    %2 = tpu.matmul %0, %1, %cst {dimension_numbers = #tpu.dot_dimension_numbers<[1], [0], [0], [1], [0, 0, 1, 1], [], []>} : vector<8x128xf32>, vector<128x128xf32>, vector<8x128xf32> -> vector<8x128xf32>
    %c0_3 = arith.constant 0 : index
    %c0_4 = arith.constant 0 : index
    %3 = vector.load %arg3[%c0_3, %c0_4] : memref<1x128xf32, #tpu.memory_space<vmem>>, vector<1x128xf32>
    %4 = vector.broadcast %3 : vector<1x128xf32> to vector<8x128xf32>
    %5 = arith.addf %2, %4 : vector<8x128xf32>
    %cst_5 = arith.constant 0.000000e+00 : f32
    %6 = vector.broadcast %cst_5 : f32 to vector<8x128xf32>
    %7 = arith.maximumf %5, %6 : vector<8x128xf32>
    %c0_6 = arith.constant 0 : index
    %c0_7 = arith.constant 0 : index
    %8 = vector.load %arg4[%c0_6, %c0_7] : memref<128x128xf32, #tpu.memory_space<vmem>>, vector<128x128xf32>
    %cst_8 = arith.constant dense<0.000000e+00> : vector<8x128xf32>
    %9 = tpu.matmul %7, %8, %cst_8 {dimension_numbers = #tpu.dot_dimension_numbers<[1], [0], [0], [1], [0, 0, 1, 1], [], []>} : vector<8x128xf32>, vector<128x128xf32>, vector<8x128xf32> -> vector<8x128xf32>
    %c0_9 = arith.constant 0 : index
    %c0_10 = arith.constant 0 : index
    %10 = vector.load %arg5[%c0_9, %c0_10] : memref<1x128xf32, #tpu.memory_space<vmem>>, vector<1x128xf32>
    %11 = vector.broadcast %10 : vector<1x128xf32> to vector<8x128xf32>
    %12 = arith.addf %9, %11 : vector<8x128xf32>
    %13 = math.tanh %12 : vector<8x128xf32>
    %c0_11 = arith.constant 0 : index
    %c0_12 = arith.constant 0 : index
    %14 = vector.load %arg6[%c0_11, %c0_12] : memref<128x128xf32, #tpu.memory_space<vmem>>, vector<128x128xf32>
    %cst_13 = arith.constant dense<0.000000e+00> : vector<8x128xf32>
    %15 = tpu.matmul %13, %14, %cst_13 {dimension_numbers = #tpu.dot_dimension_numbers<[1], [0], [0], [1], [0, 0, 1, 1], [], []>} : vector<8x128xf32>, vector<128x128xf32>, vector<8x128xf32> -> vector<8x128xf32>
    %c0_14 = arith.constant 0 : index
    %c0_15 = arith.constant 0 : index
    %16 = vector.load %arg7[%c0_14, %c0_15] : memref<1x128xf32, #tpu.memory_space<vmem>>, vector<1x128xf32>
    %17 = vector.broadcast %16 : vector<1x128xf32> to vector<8x128xf32>
    %18 = arith.addf %15, %17 : vector<8x128xf32>
    %cst_16 = arith.constant 0.000000e+00 : f32
    %19 = vector.broadcast %cst_16 : f32 to vector<8x128xf32>
    %20 = arith.maximumf %18, %19 : vector<8x128xf32>
    %c0_17 = arith.constant 0 : index
    %c0_18 = arith.constant 0 : index
    %21 = vector.load %arg8[%c0_17, %c0_18] : memref<128x128xf32, #tpu.memory_space<vmem>>, vector<128x128xf32>
    %cst_19 = arith.constant dense<0.000000e+00> : vector<8x128xf32>
    %22 = tpu.matmul %20, %21, %cst_19 {dimension_numbers = #tpu.dot_dimension_numbers<[1], [0], [0], [1], [0, 0, 1, 1], [], []>} : vector<8x128xf32>, vector<128x128xf32>, vector<8x128xf32> -> vector<8x128xf32>
    %c0_20 = arith.constant 0 : index
    %c0_21 = arith.constant 0 : index
    %23 = vector.load %arg9[%c0_20, %c0_21] : memref<1x128xf32, #tpu.memory_space<vmem>>, vector<1x128xf32>
    %24 = vector.broadcast %23 : vector<1x128xf32> to vector<8x128xf32>
    %25 = arith.addf %22, %24 : vector<8x128xf32>
    %c0_22 = arith.constant 0 : index
    %c0_23 = arith.constant 0 : index
    %26 = vector.load %arg10[%c0_22, %c0_23] : memref<8x128xf32, #tpu.memory_space<vmem>>, vector<8x128xf32>
    tpu.vector_store %arg10[%c0_22, %c0_23], %25 {strides = array<i32>} : memref<8x128xf32, #tpu.memory_space<vmem>>, vector<8x128xf32>,
    return
  }
  func.func @transform_0(%arg0: i32) -> (i32, i32) {
    %c0_i32 = arith.constant 0 : i32
    %c0_i32_0 = arith.constant 0 : i32
    return %arg0, %c0_i32 : i32, i32
  }
  func.func @transform_1(%arg0: i32) -> (i32, i32) {
    %c0_i32 = arith.constant 0 : i32
    %c0_i32_0 = arith.constant 0 : i32
    %c0_i32_1 = arith.constant 0 : i32
    return %c0_i32, %c0_i32_0 : i32, i32
  }
  func.func @transform_2(%arg0: i32) -> (i32, i32) {
    %c0_i32 = arith.constant 0 : i32
    %c0_i32_0 = arith.constant 0 : i32
    %c0_i32_1 = arith.constant 0 : i32
    return %c0_i32, %c0_i32_0 : i32, i32
  }
  func.func @transform_3(%arg0: i32) -> (i32, i32) {
    %c0_i32 = arith.constant 0 : i32
    %c0_i32_0 = arith.constant 0 : i32
    %c0_i32_1 = arith.constant 0 : i32
    return %c0_i32, %c0_i32_0 : i32, i32
  }
  func.func @transform_4(%arg0: i32) -> (i32, i32) {
    %c0_i32 = arith.constant 0 : i32
    %c0_i32_0 = arith.constant 0 : i32
    %c0_i32_1 = arith.constant 0 : i32
    return %c0_i32, %c0_i32_0 : i32, i32
  }
  func.func @transform_5(%arg0: i32) -> (i32, i32) {
    %c0_i32 = arith.constant 0 : i32
    %c0_i32_0 = arith.constant 0 : i32
    %c0_i32_1 = arith.constant 0 : i32
    return %c0_i32, %c0_i32_0 : i32, i32
  }
  func.func @transform_6(%arg0: i32) -> (i32, i32) {
    %c0_i32 = arith.constant 0 : i32
    %c0_i32_0 = arith.constant 0 : i32
    %c0_i32_1 = arith.constant 0 : i32
    return %c0_i32, %c0_i32_0 : i32, i32
  }
  func.func @transform_7(%arg0: i32) -> (i32, i32) {
    %c0_i32 = arith.constant 0 : i32
    %c0_i32_0 = arith.constant 0 : i32
    %c0_i32_1 = arith.constant 0 : i32
    return %c0_i32, %c0_i32_0 : i32, i32
  }
  func.func @transform_8(%arg0: i32) -> (i32, i32) {
    %c0_i32 = arith.constant 0 : i32
    %c0_i32_0 = arith.constant 0 : i32
    %c0_i32_1 = arith.constant 0 : i32
    return %c0_i32, %c0_i32_0 : i32, i32
  }
  func.func @transform_9(%arg0: i32) -> (i32, i32) {
    %c0_i32 = arith.constant 0 : i32
    %c0_i32_0 = arith.constant 0 : i32
    return %arg0, %c0_i32 : i32, i32
  }
}

</mosaic_0001>

<llo_original>
// kernel: autoencoder_forward.1
$region0: #{autoencoder_forward.1}
  #allocation0 [shape = 'u32[]', space=smem, size = 0x4, offset = 0x4, fixed_abs, tag = 'smem constant byte address 0x4 - core index']
  #allocation1 [shape = 'u32[144,128]{1,0:T(1,128)}', space=vmem, size = 0x12000, scoped, tag = 'internal scratch']
  %s0 = inlined_call_operand.vmem [shape: f32[8,128], index: 0, kind: input, shape index: {}]
  %s1 = inlined_call_operand.vmem [shape: f32[128,128], index: 1, kind: input, shape index: {}]
  %s2 = inlined_call_operand.vmem [shape: f32[1,128], index: 2, kind: input, shape index: {}]
  %s3 = inlined_call_operand.vmem [shape: f32[128,128], index: 3, kind: input, shape index: {}]
  %s4 = inlined_call_operand.vmem [shape: f32[1,128], index: 4, kind: input, shape index: {}]
  %s5 = inlined_call_operand.vmem [shape: f32[128,128], index: 5, kind: input, shape index: {}]
  %s6 = inlined_call_operand.vmem [shape: f32[1,128], index: 6, kind: input, shape index: {}]
  %s7 = inlined_call_operand.vmem [shape: f32[128,128], index: 7, kind: input, shape index: {}]
  %s8 = inlined_call_operand.vmem [shape: f32[1,128], index: 8, kind: input, shape index: {}]
  %s9 = inlined_call_operand.hbm [shape: f32[8,128], index: 9, kind: output, shape index: {}]
  %s10 = sld [smem:[#allocation0]]
  $region46: #{autoencoder_forward.1} parent=0
    _
  %s12 = ssub.s32 1, %s10
  %s13 = scalar_select 0, %s12, %s10
  $region1: #{autoencoder_forward.1} parent=0
    #allocation2 [shape = 'u8[4096]{0}', space=vmem, size = 0x1000, scoped, tag = 'output window, operand 0, single buffered']
    #allocation3 [shape = 's32[1]{0}', space=sflag, size = 0x4, scoped, tag = 'scoped memory for autoencoder_forward.1']
    %14 = vsyncpa [#allocation3], 0
    // Predicated region
    $region2: #{autoencoder_forward.1} parent=1 // pred_check
      _
    $region3: #{autoencoder_forward.1} parent=1 // pred_check_branch
      %16 = sbr.rel (0) target = $region5
    $region4: #{autoencoder_forward.1} parent=1 // pred_region
      _
    $region5: #{autoencoder_forward.1} parent=1 // pred_fallthru
      _
    // Predicated region
    $region6: #{autoencoder_forward.1} parent=1 // pred_check
      _
    $region7: #{autoencoder_forward.1} parent=1 // pred_check_branch
      %18 = sbr.rel (0) target = $region9
    $region8: #{autoencoder_forward.1} parent=1 // pred_region
      _
    $region9: #{autoencoder_forward.1} parent=1 // pred_fallthru
      _
    // Predicated region
    $region10: #{autoencoder_forward.1} parent=1 // pred_check
      _
    $region11: #{autoencoder_forward.1} parent=1 // pred_check_branch
      %20 = sbr.rel (0) target = $region13
    $region12: #{autoencoder_forward.1} parent=1 // pred_region
      _
    $region13: #{autoencoder_forward.1} parent=1 // pred_fallthru
      _
    // Predicated region
    $region14: #{autoencoder_forward.1} parent=1 // pred_check
      _
    $region15: #{autoencoder_forward.1} parent=1 // pred_check_branch
      %22 = sbr.rel (0) target = $region17
    $region16: #{autoencoder_forward.1} parent=1 // pred_region
      _
    $region17: #{autoencoder_forward.1} parent=1 // pred_fallthru
      _
    // Predicated region
    $region18: #{autoencoder_forward.1} parent=1 // pred_check
      _
    $region19: #{autoencoder_forward.1} parent=1 // pred_check_branch
      %24 = sbr.rel (0) target = $region21
    $region20: #{autoencoder_forward.1} parent=1 // pred_region
      _
    $region21: #{autoencoder_forward.1} parent=1 // pred_fallthru
      _
    // Predicated region
    $region22: #{autoencoder_forward.1} parent=1 // pred_check
      _
    $region23: #{autoencoder_forward.1} parent=1 // pred_check_branch
      %26 = sbr.rel (0) target = $region25
    $region24: #{autoencoder_forward.1} parent=1 // pred_region
      _
    $region25: #{autoencoder_forward.1} parent=1 // pred_fallthru
      _
    // Predicated region
    $region26: #{autoencoder_forward.1} parent=1 // pred_check
      _
    $region27: #{autoencoder_forward.1} parent=1 // pred_check_branch
      %28 = sbr.rel (0) target = $region29
    $region28: #{autoencoder_forward.1} parent=1 // pred_region
      _
    $region29: #{autoencoder_forward.1} parent=1 // pred_fallthru
      _
    // Predicated region
    $region30: #{autoencoder_forward.1} parent=1 // pred_check
      _
    $region31: #{autoencoder_forward.1} parent=1 // pred_check_branch
      %30 = sbr.rel (0) target = $region33
    $region32: #{autoencoder_forward.1} parent=1 // pred_region
      _
    $region33: #{autoencoder_forward.1} parent=1 // pred_fallthru
      _
    // Predicated region
    $region34: #{autoencoder_forward.1} parent=1 // pred_check
      _
    $region35: #{autoencoder_forward.1} parent=1 // pred_check_branch
      %32 = sbr.rel (0) target = $region37
    $region36: #{autoencoder_forward.1} parent=1 // pred_region
      _
    $region37: #{autoencoder_forward.1} parent=1 // pred_fallthru
      _
    %v33 = vld [vmem:[%s0] sm:$0xff]
    %v34 = vld [vmem:[%s1] sm:$0xff]
    %v35 = vld [vmem:[%s1 + $0x8] sm:$0xff]
    %v36 = vld [vmem:[%s1 + $0x10] sm:$0xff]
    %v37 = vld [vmem:[%s1 + $0x18] sm:$0xff]
    %v38 = vld [vmem:[%s1 + $0x20] sm:$0xff]
    %v39 = vld [vmem:[%s1 + $0x28] sm:$0xff]
    %v40 = vld [vmem:[%s1 + $0x30] sm:$0xff]
    %v41 = vld [vmem:[%s1 + $0x38] sm:$0xff]
    %v42 = vld [vmem:[%s1 + $0x40] sm:$0xff]
    %v43 = vld [vmem:[%s1 + $0x48] sm:$0xff]
    %v44 = vld [vmem:[%s1 + $0x50] sm:$0xff]
    %v45 = vld [vmem:[%s1 + $0x58] sm:$0xff]
    %v46 = vld [vmem:[%s1 + $0x60] sm:$0xff]
    %v47 = vld [vmem:[%s1 + $0x68] sm:$0xff]
    %v48 = vld [vmem:[%s1 + $0x70] sm:$0xff]
    %v49 = vld [vmem:[%s1 + $0x78] sm:$0xff]
    %v50 = vld [vmem:[%s2] sm:$0x1]
    %v52 = vlaneseq
    %v53 = vshrl.u32 %v52, 7
    %v54 = vsub.s32 0, %v53
    %v55 = vrot.slane %v50, %v54
    %57 = vmatprep.subr.mxu0 0.0
    %58 = vmatpush1.msra.mxu0 %v49
    %59 = vmatprep.subr.mxu0 0.0
    %60 = vmatpush1.msra.mxu0 %v48
    %61 = vmatprep.subr.mxu0 0.0
    %62 = vmatpush1.msra.mxu0 %v47
    %63 = vmatprep.subr.mxu0 0.0
    %64 = vmatpush1.msra.mxu0 %v46
    %65 = vmatprep.subr.mxu0 0.0
    %66 = vmatpush1.msra.mxu0 %v45
    %67 = vmatprep.subr.mxu0 0.0
    %68 = vmatpush1.msra.mxu0 %v44
    %69 = vmatprep.subr.mxu0 0.0
    %70 = vmatpush1.msra.mxu0 %v43
    %71 = vmatprep.subr.mxu0 0.0
    %72 = vmatpush1.msra.mxu0 %v42
    %73 = vmatprep.subr.mxu0 0.0
    %74 = vmatpush1.msra.mxu0 %v41
    %75 = vmatprep.subr.mxu0 0.0
    %76 = vmatpush1.msra.mxu0 %v40
    %77 = vmatprep.subr.mxu0 0.0
    %78 = vmatpush1.msra.mxu0 %v39
    %79 = vmatprep.subr.mxu0 0.0
    %80 = vmatpush1.msra.mxu0 %v38
    %81 = vmatprep.subr.mxu0 0.0
    %82 = vmatpush1.msra.mxu0 %v37
    %83 = vmatprep.subr.mxu0 0.0
    %84 = vmatpush1.msra.mxu0 %v36
    %85 = vmatprep.subr.mxu0 0.0
    %86 = vmatpush1.msra.mxu0 %v35
    %87 = vmatprep.subr.mxu0 0.0
    %88 = vmatpush1.msra.mxu0 %v34
    %89 = vmatprep.subr.mxu0 0.0
    %90 = vmatpush2.msra.mxu0 0.0
    %91 = vmatprep.subr.mxu0 0.0
    %92 = vmatpush2.msra.mxu0 0.0
    %93 = vmatprep.subr.mxu0 0.0
    %94 = vmatpush2.msra.mxu0 0.0
    %95 = vmatprep.subr.mxu0 0.0
    %96 = vmatpush2.msra.mxu0 0.0
    %97 = vmatprep.subr.mxu0 0.0
    %98 = vmatpush2.msra.mxu0 0.0
    %99 = vmatprep.subr.mxu0 0.0
    %100 = vmatpush2.msra.mxu0 0.0
    %101 = vmatprep.subr.mxu0 0.0
    %102 = vmatpush2.msra.mxu0 0.0
    %103 = vmatprep.subr.mxu0 0.0
    %104 = vmatpush2.msra.mxu0 0.0
    %105 = vmatprep.subr.mxu0 0.0
    %106 = vmatpush2.msra.mxu0 0.0
    %107 = vmatprep.subr.mxu0 0.0
    %108 = vmatpush2.msra.mxu0 0.0
    %109 = vmatprep.subr.mxu0 0.0
    %110 = vmatpush2.msra.mxu0 0.0
    %111 = vmatprep.subr.mxu0 0.0
    %112 = vmatpush2.msra.mxu0 0.0
    %113 = vmatprep.subr.mxu0 0.0
    %114 = vmatpush2.msra.mxu0 0.0
    %115 = vmatprep.subr.mxu0 0.0
    %116 = vmatpush2.msra.mxu0 0.0
    %117 = vmatprep.subr.mxu0 0.0
    %118 = vmatpush2.msra.mxu0 0.0
    %119 = vmatprep.subr.mxu0 0.0
    %120 = vmatpush2.msra.mxu0 0.0
    %121 = vmatprep.mubr.f32.mxu0 0.0
    %122 = vmatmul.mubr.f32.gmra.mxu0 %v33
    %v123 = vpop.f32.mrf.mxu0
    %v124 = vadd.f32 %v55, %v123
    %v125 = vpop.f32.mrf.mxu0
    %126 = vdwg.mxu0
    %v127 = vmax.f32 %v124, 0.0
    %v128 = vld [vmem:[%s3] sm:$0xff]
    %v129 = vld [vmem:[%s3 + $0x8] sm:$0xff]
    %v130 = vld [vmem:[%s3 + $0x10] sm:$0xff]
    %v131 = vld [vmem:[%s3 + $0x18] sm:$0xff]
    %v132 = vld [vmem:[%s3 + $0x20] sm:$0xff]
    %v133 = vld [vmem:[%s3 + $0x28] sm:$0xff]
    %v134 = vld [vmem:[%s3 + $0x30] sm:$0xff]
    %v135 = vld [vmem:[%s3 + $0x38] sm:$0xff]
    %v136 = vld [vmem:[%s3 + $0x40] sm:$0xff]
    %v137 = vld [vmem:[%s3 + $0x48] sm:$0xff]
    %v138 = vld [vmem:[%s3 + $0x50] sm:$0xff]
    %v139 = vld [vmem:[%s3 + $0x58] sm:$0xff]
    %v140 = vld [vmem:[%s3 + $0x60] sm:$0xff]
    %v141 = vld [vmem:[%s3 + $0x68] sm:$0xff]
    %v142 = vld [vmem:[%s3 + $0x70] sm:$0xff]
    %v143 = vld [vmem:[%s3 + $0x78] sm:$0xff]
    %v144 = vld [vmem:[%s4] sm:$0x1]
    %v146 = vlaneseq
    %v147 = vshrl.u32 %v146, 7
    %v148 = vsub.s32 0, %v147
    %v149 = vrot.slane %v144, %v148
    %151 = vmatprep.subr.mxu0 0.0
    %152 = vmatpush1.msra.mxu0 %v143
    %153 = vmatprep.subr.mxu0 0.0
    %154 = vmatpush1.msra.mxu0 %v142
    %155 = vmatprep.subr.mxu0 0.0
    %156 = vmatpush1.msra.mxu0 %v141
    %157 = vmatprep.subr.mxu0 0.0
    %158 = vmatpush1.msra.mxu0 %v140
    %159 = vmatprep.subr.mxu0 0.0
    %160 = vmatpush1.msra.mxu0 %v139
    %161 = vmatprep.subr.mxu0 0.0
    %162 = vmatpush1.msra.mxu0 %v138
    %163 = vmatprep.subr.mxu0 0.0
    %164 = vmatpush1.msra.mxu0 %v137
    %165 = vmatprep.subr.mxu0 0.0
    %166 = vmatpush1.msra.mxu0 %v136
    %167 = vmatprep.subr.mxu0 0.0
    %168 = vmatpush1.msra.mxu0 %v135
    %169 = vmatprep.subr.mxu0 0.0
    %170 = vmatpush1.msra.mxu0 %v134
    %171 = vmatprep.subr.mxu0 0.0
    %172 = vmatpush1.msra.mxu0 %v133
    %173 = vmatprep.subr.mxu0 0.0
    %174 = vmatpush1.msra.mxu0 %v132
    %175 = vmatprep.subr.mxu0 0.0
    %176 = vmatpush1.msra.mxu0 %v131
    %177 = vmatprep.subr.mxu0 0.0
    %178 = vmatpush1.msra.mxu0 %v130
    %179 = vmatprep.subr.mxu0 0.0
    %180 = vmatpush1.msra.mxu0 %v129
    %181 = vmatprep.subr.mxu0 0.0
    %182 = vmatpush1.msra.mxu0 %v128
    %183 = vmatprep.subr.mxu0 0.0
    %184 = vmatpush2.msra.mxu0 0.0
    %185 = vmatprep.subr.mxu0 0.0
    %186 = vmatpush2.msra.mxu0 0.0
    %187 = vmatprep.subr.mxu0 0.0
    %188 = vmatpush2.msra.mxu0 0.0
    %189 = vmatprep.subr.mxu0 0.0
    %190 = vmatpush2.msra.mxu0 0.0
    %191 = vmatprep.subr.mxu0 0.0
    %192 = vmatpush2.msra.mxu0 0.0
    %193 = vmatprep.subr.mxu0 0.0
    %194 = vmatpush2.msra.mxu0 0.0
    %195 = vmatprep.subr.mxu0 0.0
    %196 = vmatpush2.msra.mxu0 0.0
    %197 = vmatprep.subr.mxu0 0.0
    %198 = vmatpush2.msra.mxu0 0.0
    %199 = vmatprep.subr.mxu0 0.0
    %200 = vmatpush2.msra.mxu0 0.0
    %201 = vmatprep.subr.mxu0 0.0
    %202 = vmatpush2.msra.mxu0 0.0
    %203 = vmatprep.subr.mxu0 0.0
    %204 = vmatpush2.msra.mxu0 0.0
    %205 = vmatprep.subr.mxu0 0.0
    %206 = vmatpush2.msra.mxu0 0.0
    %207 = vmatprep.subr.mxu0 0.0
    %208 = vmatpush2.msra.mxu0 0.0
    %209 = vmatprep.subr.mxu0 0.0
    %210 = vmatpush2.msra.mxu0 0.0
    %211 = vmatprep.subr.mxu0 0.0
    %212 = vmatpush2.msra.mxu0 0.0
    %213 = vmatprep.subr.mxu0 0.0
    %214 = vmatpush2.msra.mxu0 0.0
    %215 = vmatprep.mubr.f32.mxu0 0.0
    %216 = vmatmul.mubr.f32.gmra.mxu0 %v127
    %v217 = vpop.f32.mrf.mxu0
    %v218 = vadd.f32 %v149, %v217
    %v219 = vpop.f32.mrf.mxu0
    %220 = vdwg.mxu0
    %v221 = vtanh.pop %v218
    %v222 = vld [vmem:[%s5] sm:$0xff]
    %v223 = vld [vmem:[%s5 + $0x8] sm:$0xff]
    %v224 = vld [vmem:[%s5 + $0x10] sm:$0xff]
    %v225 = vld [vmem:[%s5 + $0x18] sm:$0xff]
    %v226 = vld [vmem:[%s5 + $0x20] sm:$0xff]
    %v227 = vld [vmem:[%s5 + $0x28] sm:$0xff]
    %v228 = vld [vmem:[%s5 + $0x30] sm:$0xff]
    %v229 = vld [vmem:[%s5 + $0x38] sm:$0xff]
    %v230 = vld [vmem:[%s5 + $0x40] sm:$0xff]
    %v231 = vld [vmem:[%s5 + $0x48] sm:$0xff]
    %v232 = vld [vmem:[%s5 + $0x50] sm:$0xff]
    %v233 = vld [vmem:[%s5 + $0x58] sm:$0xff]
    %v234 = vld [vmem:[%s5 + $0x60] sm:$0xff]
    %v235 = vld [vmem:[%s5 + $0x68] sm:$0xff]
    %v236 = vld [vmem:[%s5 + $0x70] sm:$0xff]
    %v237 = vld [vmem:[%s5 + $0x78] sm:$0xff]
    %v238 = vld [vmem:[%s6] sm:$0x1]
    %v240 = vlaneseq
    %v241 = vshrl.u32 %v240, 7
    %v242 = vsub.s32 0, %v241
    %v243 = vrot.slane %v238, %v242
    %245 = vmatprep.subr.mxu0 0.0
    %246 = vmatpush1.msra.mxu0 %v237
    %247 = vmatprep.subr.mxu0 0.0
    %248 = vmatpush1.msra.mxu0 %v236
    %249 = vmatprep.subr.mxu0 0.0
    %250 = vmatpush1.msra.mxu0 %v235
    %251 = vmatprep.subr.mxu0 0.0
    %252 = vmatpush1.msra.mxu0 %v234
    %253 = vmatprep.subr.mxu0 0.0
    %254 = vmatpush1.msra.mxu0 %v233
    %255 = vmatprep.subr.mxu0 0.0
    %256 = vmatpush1.msra.mxu0 %v232
    %257 = vmatprep.subr.mxu0 0.0
    %258 = vmatpush1.msra.mxu0 %v231
    %259 = vmatprep.subr.mxu0 0.0
    %260 = vmatpush1.msra.mxu0 %v230
    %261 = vmatprep.subr.mxu0 0.0
    %262 = vmatpush1.msra.mxu0 %v229
    %263 = vmatprep.subr.mxu0 0.0
    %264 = vmatpush1.msra.mxu0 %v228
    %265 = vmatprep.subr.mxu0 0.0
    %266 = vmatpush1.msra.mxu0 %v227
    %267 = vmatprep.subr.mxu0 0.0
    %268 = vmatpush1.msra.mxu0 %v226
    %269 = vmatprep.subr.mxu0 0.0
    %270 = vmatpush1.msra.mxu0 %v225
    %271 = vmatprep.subr.mxu0 0.0
    %272 = vmatpush1.msra.mxu0 %v224
    %273 = vmatprep.subr.mxu0 0.0
    %274 = vmatpush1.msra.mxu0 %v223
    %275 = vmatprep.subr.mxu0 0.0
    %276 = vmatpush1.msra.mxu0 %v222
    %277 = vmatprep.subr.mxu0 0.0
    %278 = vmatpush2.msra.mxu0 0.0
    %279 = vmatprep.subr.mxu0 0.0
    %280 = vmatpush2.msra.mxu0 0.0
    %281 = vmatprep.subr.mxu0 0.0
    %282 = vmatpush2.msra.mxu0 0.0
    %283 = vmatprep.subr.mxu0 0.0
    %284 = vmatpush2.msra.mxu0 0.0
    %285 = vmatprep.subr.mxu0 0.0
    %286 = vmatpush2.msra.mxu0 0.0
    %287 = vmatprep.subr.mxu0 0.0
    %288 = vmatpush2.msra.mxu0 0.0
    %289 = vmatprep.subr.mxu0 0.0
    %290 = vmatpush2.msra.mxu0 0.0
    %291 = vmatprep.subr.mxu0 0.0
    %292 = vmatpush2.msra.mxu0 0.0
    %293 = vmatprep.subr.mxu0 0.0
    %294 = vmatpush2.msra.mxu0 0.0
    %295 = vmatprep.subr.mxu0 0.0
    %296 = vmatpush2.msra.mxu0 0.0
    %297 = vmatprep.subr.mxu0 0.0
    %298 = vmatpush2.msra.mxu0 0.0
    %299 = vmatprep.subr.mxu0 0.0
    %300 = vmatpush2.msra.mxu0 0.0
    %301 = vmatprep.subr.mxu0 0.0
    %302 = vmatpush2.msra.mxu0 0.0
    %303 = vmatprep.subr.mxu0 0.0
    %304 = vmatpush2.msra.mxu0 0.0
    %305 = vmatprep.subr.mxu0 0.0
    %306 = vmatpush2.msra.mxu0 0.0
    %307 = vmatprep.subr.mxu0 0.0
    %308 = vmatpush2.msra.mxu0 0.0
    %309 = vmatprep.mubr.f32.mxu0 0.0
    %310 = vmatmul.mubr.f32.gmra.mxu0 %v221
    %v311 = vpop.f32.mrf.mxu0
    %v312 = vadd.f32 %v243, %v311
    %v313 = vpop.f32.mrf.mxu0
    %314 = vdwg.mxu0
    %v315 = vmax.f32 %v312, 0.0
    %v316 = vld [vmem:[%s7] sm:$0xff]
    %v317 = vld [vmem:[%s7 + $0x8] sm:$0xff]
    %v318 = vld [vmem:[%s7 + $0x10] sm:$0xff]
    %v319 = vld [vmem:[%s7 + $0x18] sm:$0xff]
    %v320 = vld [vmem:[%s7 + $0x20] sm:$0xff]
    %v321 = vld [vmem:[%s7 + $0x28] sm:$0xff]
    %v322 = vld [vmem:[%s7 + $0x30] sm:$0xff]
    %v323 = vld [vmem:[%s7 + $0x38] sm:$0xff]
    %v324 = vld [vmem:[%s7 + $0x40] sm:$0xff]
    %v325 = vld [vmem:[%s7 + $0x48] sm:$0xff]
    %v326 = vld [vmem:[%s7 + $0x50] sm:$0xff]
    %v327 = vld [vmem:[%s7 + $0x58] sm:$0xff]
    %v328 = vld [vmem:[%s7 + $0x60] sm:$0xff]
    %v329 = vld [vmem:[%s7 + $0x68] sm:$0xff]
    %v330 = vld [vmem:[%s7 + $0x70] sm:$0xff]
    %v331 = vld [vmem:[%s7 + $0x78] sm:$0xff]
    %v332 = vld [vmem:[%s8] sm:$0x1]
    %v334 = vlaneseq
    %v335 = vshrl.u32 %v334, 7
    %v336 = vsub.s32 0, %v335
    %v337 = vrot.slane %v332, %v336
    %339 = vmatprep.subr.mxu0 0.0
    %340 = vmatpush1.msra.mxu0 %v331
    %341 = vmatprep.subr.mxu0 0.0
    %342 = vmatpush1.msra.mxu0 %v330
    %343 = vmatprep.subr.mxu0 0.0
    %344 = vmatpush1.msra.mxu0 %v329
    %345 = vmatprep.subr.mxu0 0.0
    %346 = vmatpush1.msra.mxu0 %v328
    %347 = vmatprep.subr.mxu0 0.0
    %348 = vmatpush1.msra.mxu0 %v327
    %349 = vmatprep.subr.mxu0 0.0
    %350 = vmatpush1.msra.mxu0 %v326
    %351 = vmatprep.subr.mxu0 0.0
    %352 = vmatpush1.msra.mxu0 %v325
    %353 = vmatprep.subr.mxu0 0.0
    %354 = vmatpush1.msra.mxu0 %v324
    %355 = vmatprep.subr.mxu0 0.0
    %356 = vmatpush1.msra.mxu0 %v323
    %357 = vmatprep.subr.mxu0 0.0
    %358 = vmatpush1.msra.mxu0 %v322
    %359 = vmatprep.subr.mxu0 0.0
    %360 = vmatpush1.msra.mxu0 %v321
    %361 = vmatprep.subr.mxu0 0.0
    %362 = vmatpush1.msra.mxu0 %v320
    %363 = vmatprep.subr.mxu0 0.0
    %364 = vmatpush1.msra.mxu0 %v319
    %365 = vmatprep.subr.mxu0 0.0
    %366 = vmatpush1.msra.mxu0 %v318
    %367 = vmatprep.subr.mxu0 0.0
    %368 = vmatpush1.msra.mxu0 %v317
    %369 = vmatprep.subr.mxu0 0.0
    %370 = vmatpush1.msra.mxu0 %v316
    %371 = vmatprep.subr.mxu0 0.0
    %372 = vmatpush2.msra.mxu0 0.0
    %373 = vmatprep.subr.mxu0 0.0
    %374 = vmatpush2.msra.mxu0 0.0
    %375 = vmatprep.subr.mxu0 0.0
    %376 = vmatpush2.msra.mxu0 0.0
    %377 = vmatprep.subr.mxu0 0.0
    %378 = vmatpush2.msra.mxu0 0.0
    %379 = vmatprep.subr.mxu0 0.0
    %380 = vmatpush2.msra.mxu0 0.0
    %381 = vmatprep.subr.mxu0 0.0
    %382 = vmatpush2.msra.mxu0 0.0
    %383 = vmatprep.subr.mxu0 0.0
    %384 = vmatpush2.msra.mxu0 0.0
    %385 = vmatprep.subr.mxu0 0.0
    %386 = vmatpush2.msra.mxu0 0.0
    %387 = vmatprep.subr.mxu0 0.0
    %388 = vmatpush2.msra.mxu0 0.0
    %389 = vmatprep.subr.mxu0 0.0
    %390 = vmatpush2.msra.mxu0 0.0
    %391 = vmatprep.subr.mxu0 0.0
    %392 = vmatpush2.msra.mxu0 0.0
    %393 = vmatprep.subr.mxu0 0.0
    %394 = vmatpush2.msra.mxu0 0.0
    %395 = vmatprep.subr.mxu0 0.0
    %396 = vmatpush2.msra.mxu0 0.0
    %397 = vmatprep.subr.mxu0 0.0
    %398 = vmatpush2.msra.mxu0 0.0
    %399 = vmatprep.subr.mxu0 0.0
    %400 = vmatpush2.msra.mxu0 0.0
    %401 = vmatprep.subr.mxu0 0.0
    %402 = vmatpush2.msra.mxu0 0.0
    %403 = vmatprep.mubr.f32.mxu0 0.0
    %404 = vmatmul.mubr.f32.gmra.mxu0 %v315
    %v405 = vpop.f32.mrf.mxu0
    %v406 = vadd.f32 %v337, %v405
    %v407 = vpop.f32.mrf.mxu0
    %408 = vdwg.mxu0
    %409 = vst [vmem:[#allocation2] sm:$0xff] %v406
    // Predicated region
    $region38: #{autoencoder_forward.1} parent=1 // pred_check
      _
    $region39: #{autoencoder_forward.1} parent=1 // pred_check_branch
      %411 = sbr.rel (0) target = $region41
    $region40: #{autoencoder_forward.1} parent=1 // pred_region
      %s413 = ssub.s32 128, 128
      %414 = vsyncadd [#allocation3], %s413
      %s416 = sshll.u32 [#allocation2], 4
      %s417 = int_to_ptr.vmem [resolvable:$true] %s416
      %419 = dma.vmem_to_hbm [thread:$0]  %s417, 128, %s9, [#allocation3]
    $region41: #{autoencoder_forward.1} parent=1 // pred_fallthru
      _
    // Predicated region
    $region42: #{autoencoder_forward.1} parent=1 // pred_check
      _
    $region43: #{autoencoder_forward.1} parent=1 // pred_check_branch
      %421 = sbr.rel (0) target = $region45
    $region44: #{autoencoder_forward.1} parent=1 // pred_region
      %422 = dma.done [#allocation3], 128
    $region45: #{autoencoder_forward.1} parent=1 // pred_fallthru
      _
    %423 = vsyncpa [#allocation3], 1

</llo_original>
